<compile_context>
chip_gen: v7x
topology: tpu7x:2x2x1
jax: 0.10.0
libtpu: 0.0.40
codegen_flags: <defaults>
</compile_context>

<pallas_src>
import functools
import math

import numpy as np
import jax
import jax.numpy as jnp
from jax.experimental import pallas as pl
from jax.experimental.pallas import tpu as pltpu

_LANES = 128
_MIB = 1024 * 1024


def _sublane(dtype) -> int:
    itemsize = jnp.dtype(dtype).itemsize
    if itemsize >= 4:
        return 8
    if itemsize == 2:
        return 16
    return 32


def _tpu_topology():
    """(per-core VMEM bytes, MXU width, TensorCores/chip) with safe fallbacks."""
    vmem = 64 * _MIB
    try:
        vmem = int(pltpu.get_tpu_info().vmem_capacity_bytes)
    except Exception:
        pass
    mxu = 256
    try:
        kind = jax.devices()[0].device_kind.lower()
        if any(t in kind for t in ("v2", "v3", "v4", "v5")):
            mxu = 128  # 128x128 MXUs on v5e-class and older parts
    except Exception:
        pass
    # Only v7x-class parts (64 MiB VMEM per TensorCore) have 2 TCs per chip.
    cores = 2 if vmem <= 64 * _MIB else 1
    return vmem, mxu, cores


def _block_budget(vmem_bytes):
    """(target f32-footprint block bytes, vmem_limit cap)."""
    if vmem_bytes >= 100 * _MIB:          # v5e / v6e: 128 MiB VMEM
        return 8 * _MIB, 96 * _MIB
    return 5 * _MIB, 48 * _MIB            # v7x: 64 MiB per TensorCore


def _pick_tile_rows(rows, padded_width, sublane, multi_tc, target_f32_bytes):
    row_bytes_f32 = padded_width * 4
    tile = max(target_f32_bytes // row_bytes_f32, sublane)
    tile = min(tile, rows)
    if multi_tc and rows > sublane:
        # Both TensorCores should get balanced work: aim for an EVEN number of
        # roughly equal blocks (not just "grid >= 2").
        nblk = max(2, pl.cdiv(rows, tile))
        if nblk % 2:
            nblk += 1
        tile = pl.cdiv(rows, nblk)
    if tile < rows:
        # Keep (sublane, lane) alignment for partial blocks.
        tile = max(pl.cdiv(tile, sublane) * sublane, sublane)
    return int(min(tile, rows))


def _ln_rows_kernel(*refs, eps, inv_n, has_bias):
    # x_ref: (tile_rows, ndim); each row normalized over the last (lane) dim.
    if has_bias:
        x_ref, w_ref, b_ref, o_ref = refs
    else:
        x_ref, w_ref, o_ref = refs
        b_ref = None
    x = x_ref[...].astype(jnp.float32)
    mean = jnp.sum(x, axis=-1, keepdims=True) * inv_n
    xc = x - mean
    # Centered variance: data is already VMEM-resident, so the second pass is
    # free at the HBM roofline and avoids E[x^2]-mean^2 cancellation.
    var = jnp.sum(xc * xc, axis=-1, keepdims=True) * inv_n
    inv = jax.lax.rsqrt(var + eps)
    y = xc * inv * w_ref[...].astype(jnp.float32)
    if b_ref is not None:
        y = y + b_ref[...].astype(jnp.float32)
    o_ref[...] = y.astype(o_ref.dtype)


def _ln_folded_kernel(*refs, eps, inv_n, has_bias):
    # x_ref: (tile_rows, W) with W = fold * ndim (lane-dense, ideally the MXU
    # width); each contiguous ndim-wide lane segment is one logical LN row.
    # seg_ref: (W, W) 0/1 bf16 block-diagonal matrix (hoisted constant input):
    # x @ seg broadcasts every segment's sum back to all lanes of the segment.
    if has_bias:
        x_ref, w_ref, b_ref, seg_ref, o_ref = refs
    else:
        x_ref, w_ref, seg_ref, o_ref = refs
        b_ref = None
    x = x_ref[...].astype(jnp.float32)
    seg = seg_ref[...]

    def seg_sum(v):
        # bf16 hi/lo split keeps the MXU segmented reduction ~f32 accurate.
        hi = v.astype(jnp.bfloat16)
        lo = (v - hi.astype(jnp.float32)).astype(jnp.bfloat16)
        return (jnp.dot(hi, seg, preferred_element_type=jnp.float32)
                + jnp.dot(lo, seg, preferred_element_type=jnp.float32))

    mean = seg_sum(x) * inv_n
    xc = x - mean
    var = seg_sum(xc * xc) * inv_n          # centered variance
    inv = jax.lax.rsqrt(var + eps)
    y = xc * inv * w_ref[...].astype(jnp.float32)
    if b_ref is not None:
        y = y + b_ref[...].astype(jnp.float32)
    o_ref[...] = y.astype(o_ref.dtype)


def layer_norm_pallas(x, weight, bias=None):
    """F.layer_norm(x, (ndim,), weight, bias) with the module's eps rule."""
    ndim = int(weight.shape[-1])
    assert x.shape[-1] == ndim
    # Torch module: eps = 1e-9 for float32 inputs, 1e-5 otherwise.
    eps = 1e-9 if x.dtype == jnp.float32 else 1e-5

    orig_shape = x.shape
    rows = int(math.prod(orig_shape[:-1]))
    has_bias = bias is not None
    itemsize = jnp.dtype(x.dtype).itemsize
    sublane = _sublane(x.dtype)

    vmem_bytes, mxu_width, n_cores = _tpu_topology()
    target_f32, vmem_cap = _block_budget(vmem_bytes)
    multi_tc = n_cores > 1

    # ---- lane folding for small / 128-unaligned feature dims ---------------
    fold, width = 1, ndim
    if ndim % _LANES != 0 and rows > 0:
        base = math.lcm(ndim, _LANES)
        cands = []
        if base < mxu_width and mxu_width % base == 0:
            cands.append(mxu_width)      # fill the 256-wide MXU on v6e/v7x
        cands.append(base)               # minimal lane-dense width
        for w_cand in cands:
            k = w_cand // ndim
            if w_cand <= 512 and k <= 32 and rows % k == 0:
                fold, width = k, w_cand
                break

    rows_eff = rows // fold
    x2 = x.reshape(rows_eff, width)

    w1 = weight.reshape(ndim)
    w2 = (jnp.tile(w1, fold) if fold > 1 else w1).reshape(1, width)
    inputs = [x2, w2]
    if has_bias:
        b1 = bias.reshape(ndim)
        b2 = (jnp.tile(b1, fold) if fold > 1 else b1).reshape(1, width)
        inputs.append(b2)
    if fold > 1:
        col = np.arange(width) // ndim
        seg_np = (col[:, None] == col[None, :]).astype(np.float32)
        inputs.append(jnp.asarray(seg_np, dtype=jnp.bfloat16))

    padded_width = pl.cdiv(width, _LANES) * _LANES
    tile_rows = _pick_tile_rows(rows_eff, padded_width, sublane, multi_tc,
                                target_f32)
    grid = (pl.cdiv(rows_eff, tile_rows),)

    # ---- VMEM budget: 2x-buffered in/out blocks + in-kernel f32 temps ------
    block_in = tile_rows * padded_width * itemsize
    block_f32 = tile_rows * padded_width * 4
    aux = 8 * padded_width * 4                        # weight / bias blocks
    if fold > 1:
        aux += 2 * padded_width * padded_width * 2    # 2x-buffered bf16 seg mat
    vmem_limit = 4 * block_in + 4 * block_f32 + aux + 2 * _MIB
    vmem_limit = int(min(max(vmem_limit, 16 * _MIB), vmem_cap))

    if fold > 1:
        kernel = functools.partial(_ln_folded_kernel, eps=eps,
                                   inv_n=1.0 / ndim, has_bias=has_bias)
    else:
        kernel = functools.partial(_ln_rows_kernel, eps=eps,
                                   inv_n=1.0 / ndim, has_bias=has_bias)

    row_spec = pl.BlockSpec((tile_rows, width), lambda i: (i, 0))
    vec_spec = pl.BlockSpec((1, width), lambda i: (0, 0))
    in_specs = [row_spec, vec_spec]
    if has_bias:
        in_specs.append(vec_spec)
    if fold > 1:
        in_specs.append(pl.BlockSpec((width, width), lambda i: (0, 0)))

    out2 = pl.pallas_call(
        kernel,
        out_shape=jax.ShapeDtypeStruct((rows_eff, width), x.dtype),
        grid_spec=pltpu.PrefetchScalarGridSpec(
            num_scalar_prefetch=0,
            grid=grid,
            in_specs=in_specs,
            out_specs=row_spec,
        ),
        compiler_params=pltpu.CompilerParams(
            dimension_semantics=("parallel",),
            vmem_limit_bytes=vmem_limit,
        ),
    )(*inputs)

    return out2.reshape(orig_shape)


def _ref_layer_norm(x, weight, bias):
    eps = 1e-9 if x.dtype == jnp.float32 else 1e-5
    xf = x.astype(jnp.float32)
    mean = jnp.mean(xf, axis=-1, keepdims=True)
    var = jnp.mean((xf - mean) ** 2, axis=-1, keepdims=True)
    y = (xf - mean) * jax.lax.rsqrt(var + eps) * weight.astype(jnp.float32)
    if bias is not None:
        y = y + bias.astype(jnp.float32)
    return y.astype(x.dtype)


if __name__ == "__main__":
    key = jax.random.PRNGKey(0)
    k1, k2, k3, k4, k5, k6, k7 = jax.random.split(key, 7)

    # Case 1: module-default params (weight=1, bias=0), hidden=32
    # -> lane-folded (small feature dim) path, MXU-width fold on v6e/v7x.
    batch, seq, hidden = 2, 8, 32
    x = jax.random.normal(k1, (batch, seq, hidden), dtype=jnp.float32)
    weight = jnp.ones((hidden,), dtype=jnp.float32)
    bias = jnp.zeros((hidden,), dtype=jnp.float32)
    out = jax.block_until_ready(layer_norm_pallas(x, weight, bias))
    assert out.shape == x.shape and out.dtype == x.dtype
    assert jnp.allclose(out, _ref_layer_norm(x, weight, bias),
                        atol=1e-4, rtol=1e-4)

    # Case 2: bias=False variant (bias=None path, no bias DMA stream).
    out_nb = jax.block_until_ready(layer_norm_pallas(x, weight, None))
    assert jnp.allclose(out_nb, _ref_layer_norm(x, weight, None),
                        atol=1e-4, rtol=1e-4)

    # Case 3: wide feature dim, non-trivial affine params, odd row count
    # -> plain row kernel (ragged / possibly balanced 2-block grid).
    x3 = jax.random.normal(k2, (3, 5, 256), dtype=jnp.float32)
    w3 = 1.0 + 0.1 * jax.random.normal(k3, (256,), dtype=jnp.float32)
    b3 = 0.1 * jax.random.normal(k4, (256,), dtype=jnp.float32)
    out3 = jax.block_until_ready(layer_norm_pallas(x3, w3, b3))
    assert jnp.allclose(out3, _ref_layer_norm(x3, w3, b3),
                        atol=1e-4, rtol=1e-4)

    # Case 4: bf16 inputs (eps = 1e-5 branch).
    x4 = jax.random.normal(k5, (2, 8, 256), dtype=jnp.bfloat16)
    out4 = jax.block_until_ready(layer_norm_pallas(x4, w3, b3))
    assert jnp.allclose(out4.astype(jnp.float32),
                        _ref_layer_norm(x4, w3, b3).astype(jnp.float32),
                        atol=3e-2, rtol=3e-2)

    # Case 5: feature dim that does NOT divide 128 (48) -> lcm-based fold.
    x5 = jax.random.normal(k6, (4, 6, 48), dtype=jnp.float32)
    w5 = 1.0 + 0.1 * jax.random.normal(k7, (48,), dtype=jnp.float32)
    b5 = 0.1 * jax.random.normal(k7, (48,), dtype=jnp.float32)
    out5 = jax.block_until_ready(layer_norm_pallas(x5, w5, b5))
    assert jnp.allclose(out5, _ref_layer_norm(x5, w5, b5),
                        atol=1e-4, rtol=1e-4)

    # Case 6: strongly shifted inputs -> centered variance stays accurate.
    x6 = x3 + 100.0
    out6 = jax.block_until_ready(layer_norm_pallas(x6, w3, b3))
    assert jnp.allclose(out6, _ref_layer_norm(x6, w3, b3),
                        atol=1e-3, rtol=1e-3)

    print("KERNEL_OK")
</pallas_src>

<mosaic_0001>
module attributes {stable_mosaic.version = 11 : i64} {
  func.func @_ln_folded_kernel(%arg0: i32, %arg1: memref<2x256xf32, #tpu.memory_space<vmem>>, %arg2: memref<1x256xf32, #tpu.memory_space<vmem>>, %arg3: memref<1x256xf32, #tpu.memory_space<vmem>>, %arg4: memref<256x256xbf16, #tpu.memory_space<vmem>>, %arg5: memref<2x256xf32, #tpu.memory_space<vmem>>) attributes {dimension_semantics = [#tpu.dimension_semantics<parallel>], iteration_bounds = array<i64: 1>, scalar_prefetch = 0 : i64, scratch_operands = 0 : i64, tpu.core_type = #tpu.core_type<tc>, window_params = [{transform_indices = @transform_0, window_bounds = array<i64: 2, 256>}, {pipeline_mode = #tpu.pipeline_mode<synchronous>, transform_indices = @transform_1, window_bounds = array<i64: 1, 256>}, {pipeline_mode = #tpu.pipeline_mode<synchronous>, transform_indices = @transform_2, window_bounds = array<i64: 1, 256>}, {pipeline_mode = #tpu.pipeline_mode<synchronous>, transform_indices = @transform_3, window_bounds = array<i64: 256, 256>}, {transform_indices = @transform_4, window_bounds = array<i64: 2, 256>}]} {
    %c0 = arith.constant 0 : index
    %c0_0 = arith.constant 0 : index
    %0 = vector.load %arg1[%c0, %c0_0] : memref<2x256xf32, #tpu.memory_space<vmem>>, vector<2x256xf32>
    %c0_1 = arith.constant 0 : index
    %c0_2 = arith.constant 0 : index
    %1 = vector.load %arg4[%c0_1, %c0_2] : memref<256x256xbf16, #tpu.memory_space<vmem>>, vector<256x256xbf16>
    %2 = arith.truncf %0 : vector<2x256xf32> to vector<2x256xbf16>
    %3 = arith.extf %2 : vector<2x256xbf16> to vector<2x256xf32>
    %4 = arith.subf %0, %3 : vector<2x256xf32>
    %5 = arith.truncf %4 : vector<2x256xf32> to vector<2x256xbf16>
    %cst = arith.constant dense<0.000000e+00> : vector<2x256xf32>
    %6 = tpu.matmul %2, %1, %cst {dimension_numbers = #tpu.dot_dimension_numbers<[1], [0], [0], [1], [0, 0, 1, 1], [], []>} : vector<2x256xbf16>, vector<256x256xbf16>, vector<2x256xf32> -> vector<2x256xf32>
    %cst_3 = arith.constant dense<0.000000e+00> : vector<2x256xf32>
    %7 = tpu.matmul %5, %1, %cst_3 {dimension_numbers = #tpu.dot_dimension_numbers<[1], [0], [0], [1], [0, 0, 1, 1], [], []>} : vector<2x256xbf16>, vector<256x256xbf16>, vector<2x256xf32> -> vector<2x256xf32>
    %8 = arith.addf %6, %7 : vector<2x256xf32>
    %cst_4 = arith.constant 3.125000e-02 : f32
    %9 = vector.broadcast %cst_4 : f32 to vector<2x256xf32>
    %10 = arith.mulf %8, %9 : vector<2x256xf32>
    %11 = arith.subf %0, %10 : vector<2x256xf32>
    %12 = arith.mulf %11, %11 : vector<2x256xf32>
    %13 = arith.truncf %12 : vector<2x256xf32> to vector<2x256xbf16>
    %14 = arith.extf %13 : vector<2x256xbf16> to vector<2x256xf32>
    %15 = arith.subf %12, %14 : vector<2x256xf32>
    %16 = arith.truncf %15 : vector<2x256xf32> to vector<2x256xbf16>
    %cst_5 = arith.constant dense<0.000000e+00> : vector<2x256xf32>
    %17 = tpu.matmul %13, %1, %cst_5 {dimension_numbers = #tpu.dot_dimension_numbers<[1], [0], [0], [1], [0, 0, 1, 1], [], []>} : vector<2x256xbf16>, vector<256x256xbf16>, vector<2x256xf32> -> vector<2x256xf32>
    %cst_6 = arith.constant dense<0.000000e+00> : vector<2x256xf32>
    %18 = tpu.matmul %16, %1, %cst_6 {dimension_numbers = #tpu.dot_dimension_numbers<[1], [0], [0], [1], [0, 0, 1, 1], [], []>} : vector<2x256xbf16>, vector<256x256xbf16>, vector<2x256xf32> -> vector<2x256xf32>
    %19 = arith.addf %17, %18 : vector<2x256xf32>
    %cst_7 = arith.constant 3.125000e-02 : f32
    %20 = vector.broadcast %cst_7 : f32 to vector<2x256xf32>
    %21 = arith.mulf %19, %20 : vector<2x256xf32>
    %cst_8 = arith.constant 9.99999971E-10 : f32
    %22 = vector.broadcast %cst_8 : f32 to vector<2x256xf32>
    %23 = arith.addf %21, %22 : vector<2x256xf32>
    %24 = math.rsqrt %23 : vector<2x256xf32>
    %25 = arith.mulf %11, %24 : vector<2x256xf32>
    %c0_9 = arith.constant 0 : index
    %c0_10 = arith.constant 0 : index
    %26 = vector.load %arg2[%c0_9, %c0_10] : memref<1x256xf32, #tpu.memory_space<vmem>>, vector<1x256xf32>
    %27 = vector.broadcast %26 : vector<1x256xf32> to vector<2x256xf32>
    %28 = arith.mulf %25, %27 : vector<2x256xf32>
    %c0_11 = arith.constant 0 : index
    %c0_12 = arith.constant 0 : index
    %29 = vector.load %arg3[%c0_11, %c0_12] : memref<1x256xf32, #tpu.memory_space<vmem>>, vector<1x256xf32>
    %30 = vector.broadcast %29 : vector<1x256xf32> to vector<2x256xf32>
    %31 = arith.addf %28, %30 : vector<2x256xf32>
    %c0_13 = arith.constant 0 : index
    %c0_14 = arith.constant 0 : index
    %32 = vector.load %arg5[%c0_13, %c0_14] : memref<2x256xf32, #tpu.memory_space<vmem>>, vector<2x256xf32>
    tpu.vector_store %arg5[%c0_13, %c0_14], %31 {strides = array<i32>} : memref<2x256xf32, #tpu.memory_space<vmem>>, vector<2x256xf32>,
    return
  }
  func.func @transform_0(%arg0: i32) -> (i32, i32) {
    %c0_i32 = arith.constant 0 : i32
    %c0_i32_0 = arith.constant 0 : i32
    return %arg0, %c0_i32 : i32, i32
  }
  func.func @transform_1(%arg0: i32) -> (i32, i32) {
    %c0_i32 = arith.constant 0 : i32
    %c0_i32_0 = arith.constant 0 : i32
    %c0_i32_1 = arith.constant 0 : i32
    return %c0_i32, %c0_i32_0 : i32, i32
  }
  func.func @transform_2(%arg0: i32) -> (i32, i32) {
    %c0_i32 = arith.constant 0 : i32
    %c0_i32_0 = arith.constant 0 : i32
    %c0_i32_1 = arith.constant 0 : i32
    return %c0_i32, %c0_i32_0 : i32, i32
  }
  func.func @transform_3(%arg0: i32) -> (i32, i32) {
    %c0_i32 = arith.constant 0 : i32
    %c0_i32_0 = arith.constant 0 : i32
    %c0_i32_1 = arith.constant 0 : i32
    return %c0_i32, %c0_i32_0 : i32, i32
  }
  func.func @transform_4(%arg0: i32) -> (i32, i32) {
    %c0_i32 = arith.constant 0 : i32
    %c0_i32_0 = arith.constant 0 : i32
    return %arg0, %c0_i32 : i32, i32
  }
}

</mosaic_0001>

<llo_original>
// kernel: tpu_custom_call.1
$region0: #{tpu_custom_call.1}
  #allocation0 [shape = 'u32[]', space=smem, size = 0x4, offset = 0x4, fixed_abs, tag = 'smem constant byte address 0x4 - core index']
  #allocation1 [shape = 'u32[144,128]{1,0:T(1,128)}', space=vmem, size = 0x12000, scoped, tag = 'internal scratch']
  %s0 = inlined_call_operand.hbm [shape: f32[2,256], index: 0, kind: input, shape index: {}]
  %s1 = inlined_call_operand.vmem [shape: f32[1,256], index: 1, kind: input, shape index: {}]
  %s2 = inlined_call_operand.vmem [shape: f32[1,256], index: 2, kind: input, shape index: {}]
  %s3 = inlined_call_operand.hbm [shape: bf16[256,256], index: 3, kind: input, shape index: {}]
  %s4 = inlined_call_operand.hbm [shape: f32[2,256], index: 4, kind: output, shape index: {}]
  %s5 = sld [smem:[#allocation0]]
  $region34: #{tpu_custom_call.1} parent=0
    _
  %s7 = ssub.s32 1, %s5
  %s8 = scalar_select 0, %s7, %s5
  $region1: #{tpu_custom_call.1} parent=0
    #allocation2 [shape = 'u8[2048]{0}', space=vmem, size = 0x800, scoped, tag = 'input window, operand 0, single buffered']
    #allocation3 [shape = 's32[1]{0}', space=sflag, size = 0x4, scoped, tag = 'scoped memory for tpu_custom_call.1']
    #allocation4 [shape = 's32[1]{0}', space=sflag, size = 0x4, scoped, tag = 'scoped memory for tpu_custom_call.1']
    #allocation5 [shape = 'u8[131072]{0}', space=vmem, size = 0x20000, scoped, tag = 'input window, operand 3, single buffered']
    #allocation6 [shape = 's32[1]{0}', space=sflag, size = 0x4, scoped, tag = 'scoped memory for tpu_custom_call.1']
    #allocation7 [shape = 'u8[2048]{0}', space=vmem, size = 0x800, scoped, tag = 'output window, operand 0, single buffered']
    %9 = vsyncpa [#allocation3], 0
    %10 = vsyncpa [#allocation6], 0
    %11 = vsyncpa [#allocation4], 0
    // Predicated region
    $region2: #{tpu_custom_call.1} parent=1 // pred_check
      _
    $region3: #{tpu_custom_call.1} parent=1 // pred_check_branch
      %13 = sbr.rel (0) target = $region5
    $region4: #{tpu_custom_call.1} parent=1 // pred_region
      %s15 = ssub.s32 64, 64
      %16 = vsyncadd [#allocation3], %s15
      %s18 = sshll.u32 [#allocation2], 4
      %s19 = int_to_ptr.vmem [resolvable:$true] %s18
      %21 = dma.hbm_to_vmem [thread:$0]  %s0, 64, %s19, [#allocation3]
    $region5: #{tpu_custom_call.1} parent=1 // pred_fallthru
      _
    // Predicated region
    $region6: #{tpu_custom_call.1} parent=1 // pred_check
      _
    $region7: #{tpu_custom_call.1} parent=1 // pred_check_branch
      %23 = sbr.rel (0) target = $region9
    $region8: #{tpu_custom_call.1} parent=1 // pred_region
      _
    $region9: #{tpu_custom_call.1} parent=1 // pred_fallthru
      _
    // Predicated region
    $region10: #{tpu_custom_call.1} parent=1 // pred_check
      _
    $region11: #{tpu_custom_call.1} parent=1 // pred_check_branch
      %25 = sbr.rel (0) target = $region13
    $region12: #{tpu_custom_call.1} parent=1 // pred_region
      _
    $region13: #{tpu_custom_call.1} parent=1 // pred_fallthru
      _
    // Predicated region
    $region14: #{tpu_custom_call.1} parent=1 // pred_check
      _
    $region15: #{tpu_custom_call.1} parent=1 // pred_check_branch
      %27 = sbr.rel (0) target = $region17
    $region16: #{tpu_custom_call.1} parent=1 // pred_region
      %s29 = ssub.s32 4096, 4096
      %30 = vsyncadd [#allocation6], %s29
      %s31 = sshll.u32 [#allocation5], 4
      %s32 = int_to_ptr.vmem [resolvable:$true] %s31
      %37 = dma.hbm_to_vmem [thread:$0]  %s3, 4096, %s32, [#allocation6], 128, 128, 8
    $region17: #{tpu_custom_call.1} parent=1 // pred_fallthru
      _
    // Predicated region
    $region18: #{tpu_custom_call.1} parent=1 // pred_check
      _
    $region19: #{tpu_custom_call.1} parent=1 // pred_check_branch
      %39 = sbr.rel (0) target = $region21
    $region20: #{tpu_custom_call.1} parent=1 // pred_region
      %40 = dma.done [#allocation3], 64
    $region21: #{tpu_custom_call.1} parent=1 // pred_fallthru
      _
    // Predicated region
    $region22: #{tpu_custom_call.1} parent=1 // pred_check
      _
    $region23: #{tpu_custom_call.1} parent=1 // pred_check_branch
      %42 = sbr.rel (0) target = $region25
    $region24: #{tpu_custom_call.1} parent=1 // pred_region
      %43 = dma.done [#allocation6], 4096
    $region25: #{tpu_custom_call.1} parent=1 // pred_fallthru
      _
    %v44 = vld [vmem:[#allocation2] sm:$0xf]
    %v45 = vld [vmem:[#allocation5] sm:$0xff]
    %v46 = vld [vmem:[#allocation5 + $0x8] sm:$0xff]
    %v47 = vld [vmem:[#allocation5 + $0x10] sm:$0xff]
    %v48 = vld [vmem:[#allocation5 + $0x18] sm:$0xff]
    %v49 = vld [vmem:[#allocation5 + $0x20] sm:$0xff]
    %v50 = vld [vmem:[#allocation5 + $0x28] sm:$0xff]
    %v51 = vld [vmem:[#allocation5 + $0x30] sm:$0xff]
    %v52 = vld [vmem:[#allocation5 + $0x38] sm:$0xff]
    %v53 = vld [vmem:[#allocation5 + $0x40] sm:$0xff]
    %v54 = vld [vmem:[#allocation5 + $0x48] sm:$0xff]
    %v55 = vld [vmem:[#allocation5 + $0x50] sm:$0xff]
    %v56 = vld [vmem:[#allocation5 + $0x58] sm:$0xff]
    %v57 = vld [vmem:[#allocation5 + $0x60] sm:$0xff]
    %v58 = vld [vmem:[#allocation5 + $0x68] sm:$0xff]
    %v59 = vld [vmem:[#allocation5 + $0x70] sm:$0xff]
    %v60 = vld [vmem:[#allocation5 + $0x78] sm:$0xff]
    %v61 = vld [vmem:[#allocation5 + $0x80] sm:$0xff]
    %v62 = vld [vmem:[#allocation5 + $0x88] sm:$0xff]
    %v63 = vld [vmem:[#allocation5 + $0x90] sm:$0xff]
    %v64 = vld [vmem:[#allocation5 + $0x98] sm:$0xff]
    %v65 = vld [vmem:[#allocation5 + $0xa0] sm:$0xff]
    %v66 = vld [vmem:[#allocation5 + $0xa8] sm:$0xff]
    %v67 = vld [vmem:[#allocation5 + $0xb0] sm:$0xff]
    %v68 = vld [vmem:[#allocation5 + $0xb8] sm:$0xff]
    %v69 = vld [vmem:[#allocation5 + $0xc0] sm:$0xff]
    %v70 = vld [vmem:[#allocation5 + $0xc8] sm:$0xff]
    %v71 = vld [vmem:[#allocation5 + $0xd0] sm:$0xff]
    %v72 = vld [vmem:[#allocation5 + $0xd8] sm:$0xff]
    %v73 = vld [vmem:[#allocation5 + $0xe0] sm:$0xff]
    %v74 = vld [vmem:[#allocation5 + $0xe8] sm:$0xff]
    %v75 = vld [vmem:[#allocation5 + $0xf0] sm:$0xff]
    %v76 = vld [vmem:[#allocation5 + $0xf8] sm:$0xff]
    %v79 = vunpack.c.l.s4 1983009808
    %v80 = vunpack.c.0.s8 %v79
    %v81 = vlaneseq
    %v82 = vshrl.u32 %v81, 7
    %v83 = vsub.s32 %v80, %v82
    %v84 = vrot.slane %v44, %v83
    %v85 = vcombine.high %v84, %v84
    %v88 = vpack.c.bf16 %v84, %v84
    %v89 = vpack.c.bf16 %v85, %v85
    %v90 = vunpack.c.l.bf16 %v88
    %v91 = vunpack.c.l.bf16 %v89
    %v94 = vcombine.low %v90, %v91
    %v96 = vunpack.c.l.s4 1983009808
    %v97 = vunpack.c.0.s8 %v96
    %v98 = vlaneseq
    %v99 = vshrl.u32 %v98, 7
    %v100 = vsub.s32 %v97, %v99
    %v101 = vrot.slane %v94, %v100
    %v103 = vsub.f32 %v44, %v101
    %v106 = vunpack.c.l.s4 1983009808
    %v107 = vunpack.c.0.s8 %v106
    %v108 = vlaneseq
    %v109 = vshrl.u32 %v108, 7
    %v110 = vsub.s32 %v107, %v109
    %v111 = vrot.slane %v103, %v110
    %v112 = vcombine.high %v111, %v111
    %v115 = vpack.c.bf16 %v111, %v111
    %v116 = vpack.c.bf16 %v112, %v112
    %v149 = vunpack.c.l.b16 %v45
    %v150 = vunpack.c.h.b16 %v45
    %v151 = vunpack.c.l.b16 %v46
    %v152 = vunpack.c.h.b16 %v46
    %v153 = vunpack.c.l.b16 %v47
    %v154 = vunpack.c.h.b16 %v47
    %v155 = vunpack.c.l.b16 %v48
    %v156 = vunpack.c.h.b16 %v48
    %v157 = vunpack.c.l.b16 %v49
    %v158 = vunpack.c.h.b16 %v49
    %v159 = vunpack.c.l.b16 %v50
    %v160 = vunpack.c.h.b16 %v50
    %v161 = vunpack.c.l.b16 %v51
    %v162 = vunpack.c.h.b16 %v51
    %v163 = vunpack.c.l.b16 %v52
    %v164 = vunpack.c.h.b16 %v52
    %v165 = vunpack.c.l.b16 %v53
    %v166 = vunpack.c.h.b16 %v53
    %v167 = vunpack.c.l.b16 %v54
    %v168 = vunpack.c.h.b16 %v54
    %v169 = vunpack.c.l.b16 %v55
    %v170 = vunpack.c.h.b16 %v55
    %v171 = vunpack.c.l.b16 %v56
    %v172 = vunpack.c.h.b16 %v56
    %v173 = vunpack.c.l.b16 %v57
    %v174 = vunpack.c.h.b16 %v57
    %v175 = vunpack.c.l.b16 %v58
    %v176 = vunpack.c.h.b16 %v58
    %v177 = vunpack.c.l.b16 %v59
    %v178 = vunpack.c.h.b16 %v59
    %v179 = vunpack.c.l.b16 %v60
    %v180 = vunpack.c.h.b16 %v60
    %v181 = vunpack.c.l.b16 %v61
    %v182 = vunpack.c.h.b16 %v61
    %v183 = vunpack.c.l.b16 %v62
    %v184 = vunpack.c.h.b16 %v62
    %v185 = vunpack.c.l.b16 %v63
    %v186 = vunpack.c.h.b16 %v63
    %v187 = vunpack.c.l.b16 %v64
    %v188 = vunpack.c.h.b16 %v64
    %v189 = vunpack.c.l.b16 %v65
    %v190 = vunpack.c.h.b16 %v65
    %v191 = vunpack.c.l.b16 %v66
    %v192 = vunpack.c.h.b16 %v66
    %v193 = vunpack.c.l.b16 %v67
    %v194 = vunpack.c.h.b16 %v67
    %v195 = vunpack.c.l.b16 %v68
    %v196 = vunpack.c.h.b16 %v68
    %v197 = vunpack.c.l.b16 %v69
    %v198 = vunpack.c.h.b16 %v69
    %v199 = vunpack.c.l.b16 %v70
    %v200 = vunpack.c.h.b16 %v70
    %v201 = vunpack.c.l.b16 %v71
    %v202 = vunpack.c.h.b16 %v71
    %v203 = vunpack.c.l.b16 %v72
    %v204 = vunpack.c.h.b16 %v72
    %v205 = vunpack.c.l.b16 %v73
    %v206 = vunpack.c.h.b16 %v73
    %v207 = vunpack.c.l.b16 %v74
    %v208 = vunpack.c.h.b16 %v74
    %v209 = vunpack.c.l.b16 %v75
    %v210 = vunpack.c.h.b16 %v75
    %v211 = vunpack.c.l.b16 %v76
    %v212 = vunpack.c.h.b16 %v76
    %v213 = vpack.c.b16 %v151, %v149
    %v214 = vpack.c.b16 %v152, %v150
    %v215 = vpack.c.b16 %v155, %v153
    %v216 = vpack.c.b16 %v156, %v154
    %v217 = vpack.c.b16 %v159, %v157
    %v218 = vpack.c.b16 %v160, %v158
    %v219 = vpack.c.b16 %v163, %v161
    %v220 = vpack.c.b16 %v164, %v162
    %v221 = vpack.c.b16 %v167, %v165
    %v222 = vpack.c.b16 %v168, %v166
    %v223 = vpack.c.b16 %v171, %v169
    %v224 = vpack.c.b16 %v172, %v170
    %v225 = vpack.c.b16 %v175, %v173
    %v226 = vpack.c.b16 %v176, %v174
    %v227 = vpack.c.b16 %v179, %v177
    %v228 = vpack.c.b16 %v180, %v178
    %v229 = vpack.c.b16 %v183, %v181
    %v230 = vpack.c.b16 %v184, %v182
    %v231 = vpack.c.b16 %v187, %v185
    %v232 = vpack.c.b16 %v188, %v186
    %v233 = vpack.c.b16 %v191, %v189
    %v234 = vpack.c.b16 %v192, %v190
    %v235 = vpack.c.b16 %v195, %v193
    %v236 = vpack.c.b16 %v196, %v194
    %v237 = vpack.c.b16 %v199, %v197
    %v238 = vpack.c.b16 %v200, %v198
    %v239 = vpack.c.b16 %v203, %v201
    %v240 = vpack.c.b16 %v204, %v202
    %v241 = vpack.c.b16 %v207, %v205
    %v242 = vpack.c.b16 %v208, %v206
    %v243 = vpack.c.b16 %v211, %v209
    %v244 = vpack.c.b16 %v212, %v210
    %277 = vmatprep.subr.bf16.mxu0 %v214
    %278 = vmatpush1.bf16.msra.mxu0 %v213
    %279 = vmatprep.subr.bf16.mxu0 %v216
    %280 = vmatpush1.bf16.msra.mxu0 %v215
    %281 = vmatprep.subr.bf16.mxu0 %v218
    %282 = vmatpush1.bf16.msra.mxu0 %v217
    %283 = vmatprep.subr.bf16.mxu0 %v220
    %284 = vmatpush1.bf16.msra.mxu0 %v219
    %285 = vmatprep.subr.bf16.mxu0 %v222
    %286 = vmatpush1.bf16.msra.mxu0 %v221
    %287 = vmatprep.subr.bf16.mxu0 %v224
    %288 = vmatpush1.bf16.msra.mxu0 %v223
    %289 = vmatprep.subr.bf16.mxu0 %v226
    %290 = vmatpush1.bf16.msra.mxu0 %v225
    %291 = vmatprep.subr.bf16.mxu0 %v228
    %292 = vmatpush1.bf16.msra.mxu0 %v227
    %293 = vmatprep.subr.bf16.mxu0 %v230
    %294 = vmatpush1.bf16.msra.mxu0 %v229
    %295 = vmatprep.subr.bf16.mxu0 %v232
    %296 = vmatpush1.bf16.msra.mxu0 %v231
    %297 = vmatprep.subr.bf16.mxu0 %v234
    %298 = vmatpush1.bf16.msra.mxu0 %v233
    %299 = vmatprep.subr.bf16.mxu0 %v236
    %300 = vmatpush1.bf16.msra.mxu0 %v235
    %301 = vmatprep.subr.bf16.mxu0 %v238
    %302 = vmatpush1.bf16.msra.mxu0 %v237
    %303 = vmatprep.subr.bf16.mxu0 %v240
    %304 = vmatpush1.bf16.msra.mxu0 %v239
    %305 = vmatprep.subr.bf16.mxu0 %v242
    %306 = vmatpush1.bf16.msra.mxu0 %v241
    %307 = vmatprep.subr.bf16.mxu0 %v244
    %308 = vmatpush1.bf16.msra.mxu0 %v243
    %309 = vmatprep.mubr.bf16.mxu0 %v116
    %310 = vmatmul.mubr.bf16.gmra.mrb[0].mxu0 %v115
    %v311 = vpop.f32.mrb[0].mxu0
    %v312 = vadd.f32 0.0, %v311
    %v313 = vpop.f32.mrb[0].mxu0
    %v314 = vadd.f32 0.0, %v313
    %v315 = vpop.f32.mrb[0].mxu0
    %v316 = vpop.f32.mrb[0].mxu0
    %317 = vdwg.mxu0
    %318 = vmatprep.subr.bf16.mxu0 %v214
    %319 = vmatpush1.bf16.msra.mxu0 %v213
    %320 = vmatprep.subr.bf16.mxu0 %v216
    %321 = vmatpush1.bf16.msra.mxu0 %v215
    %322 = vmatprep.subr.bf16.mxu0 %v218
    %323 = vmatpush1.bf16.msra.mxu0 %v217
    %324 = vmatprep.subr.bf16.mxu0 %v220
    %325 = vmatpush1.bf16.msra.mxu0 %v219
    %326 = vmatprep.subr.bf16.mxu0 %v222
    %327 = vmatpush1.bf16.msra.mxu0 %v221
    %328 = vmatprep.subr.bf16.mxu0 %v224
    %329 = vmatpush1.bf16.msra.mxu0 %v223
    %330 = vmatprep.subr.bf16.mxu0 %v226
    %331 = vmatpush1.bf16.msra.mxu0 %v225
    %332 = vmatprep.subr.bf16.mxu0 %v228
    %333 = vmatpush1.bf16.msra.mxu0 %v227
    %334 = vmatprep.subr.bf16.mxu0 %v230
    %335 = vmatpush1.bf16.msra.mxu0 %v229
    %336 = vmatprep.subr.bf16.mxu0 %v232
    %337 = vmatpush1.bf16.msra.mxu0 %v231
    %338 = vmatprep.subr.bf16.mxu0 %v234
    %339 = vmatpush1.bf16.msra.mxu0 %v233
    %340 = vmatprep.subr.bf16.mxu0 %v236
    %341 = vmatpush1.bf16.msra.mxu0 %v235
    %342 = vmatprep.subr.bf16.mxu0 %v238
    %343 = vmatpush1.bf16.msra.mxu0 %v237
    %344 = vmatprep.subr.bf16.mxu0 %v240
    %345 = vmatpush1.bf16.msra.mxu0 %v239
    %346 = vmatprep.subr.bf16.mxu0 %v242
    %347 = vmatpush1.bf16.msra.mxu0 %v241
    %348 = vmatprep.subr.bf16.mxu0 %v244
    %349 = vmatpush1.bf16.msra.mxu0 %v243
    %350 = vmatprep.mubr.bf16.mxu0 %v89
    %351 = vmatmul.mubr.bf16.gmra.mrb[0].mxu0 %v88
    %v352 = vpop.f32.mrb[0].mxu0
    %v353 = vadd.f32 %v312, %v352
    %v354 = vpop.f32.mrb[0].mxu0
    %v355 = vadd.f32 %v314, %v354
    %v356 = vpop.f32.mrb[0].mxu0
    %v357 = vpop.f32.mrb[0].mxu0
    %358 = vdwg.mxu0
    %v359 = vmul.f32 %v353, 0.03125
    %v360 = vmul.f32 %v355, 0.03125
    %v363 = vcombine.low %v359, %v360
    %v365 = vunpack.c.l.s4 1983009808
    %v366 = vunpack.c.0.s8 %v365
    %v367 = vlaneseq
    %v368 = vshrl.u32 %v367, 7
    %v369 = vsub.s32 %v366, %v368
    %v370 = vrot.slane %v363, %v369
    %v372 = vsub.f32 %v44, %v370
    %v373 = vmul.f32 %v372, %v372
    %v376 = vunpack.c.l.s4 1983009808
    %v377 = vunpack.c.0.s8 %v376
    %v378 = vlaneseq
    %v379 = vshrl.u32 %v378, 7
    %v380 = vsub.s32 %v377, %v379
    %v381 = vrot.slane %v373, %v380
    %v382 = vcombine.high %v381, %v381
    %v385 = vpack.c.bf16 %v381, %v381
    %v386 = vpack.c.bf16 %v382, %v382
    %v387 = vunpack.c.l.bf16 %v385
    %v388 = vunpack.c.l.bf16 %v386
    %v391 = vcombine.low %v387, %v388
    %v393 = vunpack.c.l.s4 1983009808
    %v394 = vunpack.c.0.s8 %v393
    %v395 = vlaneseq
    %v396 = vshrl.u32 %v395, 7
    %v397 = vsub.s32 %v394, %v396
    %v398 = vrot.slane %v391, %v397
    %v400 = vsub.f32 %v373, %v398
    %v403 = vunpack.c.l.s4 1983009808
    %v404 = vunpack.c.0.s8 %v403
    %v405 = vlaneseq
    %v406 = vshrl.u32 %v405, 7
    %v407 = vsub.s32 %v404, %v406
    %v408 = vrot.slane %v400, %v407
    %v409 = vcombine.high %v408, %v408
    %v412 = vpack.c.bf16 %v408, %v408
    %v413 = vpack.c.bf16 %v409, %v409
    %414 = vmatprep.subr.bf16.mxu0 %v214
    %415 = vmatpush1.bf16.msra.mxu0 %v213
    %416 = vmatprep.subr.bf16.mxu0 %v216
    %417 = vmatpush1.bf16.msra.mxu0 %v215
    %418 = vmatprep.subr.bf16.mxu0 %v218
    %419 = vmatpush1.bf16.msra.mxu0 %v217
    %420 = vmatprep.subr.bf16.mxu0 %v220
    %421 = vmatpush1.bf16.msra.mxu0 %v219
    %422 = vmatprep.subr.bf16.mxu0 %v222
    %423 = vmatpush1.bf16.msra.mxu0 %v221
    %424 = vmatprep.subr.bf16.mxu0 %v224
    %425 = vmatpush1.bf16.msra.mxu0 %v223
    %426 = vmatprep.subr.bf16.mxu0 %v226
    %427 = vmatpush1.bf16.msra.mxu0 %v225
    %428 = vmatprep.subr.bf16.mxu0 %v228
    %429 = vmatpush1.bf16.msra.mxu0 %v227
    %430 = vmatprep.subr.bf16.mxu0 %v230
    %431 = vmatpush1.bf16.msra.mxu0 %v229
    %432 = vmatprep.subr.bf16.mxu0 %v232
    %433 = vmatpush1.bf16.msra.mxu0 %v231
    %434 = vmatprep.subr.bf16.mxu0 %v234
    %435 = vmatpush1.bf16.msra.mxu0 %v233
    %436 = vmatprep.subr.bf16.mxu0 %v236
    %437 = vmatpush1.bf16.msra.mxu0 %v235
    %438 = vmatprep.subr.bf16.mxu0 %v238
    %439 = vmatpush1.bf16.msra.mxu0 %v237
    %440 = vmatprep.subr.bf16.mxu0 %v240
    %441 = vmatpush1.bf16.msra.mxu0 %v239
    %442 = vmatprep.subr.bf16.mxu0 %v242
    %443 = vmatpush1.bf16.msra.mxu0 %v241
    %444 = vmatprep.subr.bf16.mxu0 %v244
    %445 = vmatpush1.bf16.msra.mxu0 %v243
    %446 = vmatprep.mubr.bf16.mxu0 %v413
    %447 = vmatmul.mubr.bf16.gmra.mrb[0].mxu0 %v412
    %v448 = vpop.f32.mrb[0].mxu0
    %v449 = vadd.f32 0.0, %v448
    %v450 = vpop.f32.mrb[0].mxu0
    %v451 = vadd.f32 0.0, %v450
    %v452 = vpop.f32.mrb[0].mxu0
    %v453 = vpop.f32.mrb[0].mxu0
    %454 = vdwg.mxu0
    %455 = vmatprep.subr.bf16.mxu0 %v214
    %456 = vmatpush1.bf16.msra.mxu0 %v213
    %457 = vmatprep.subr.bf16.mxu0 %v216
    %458 = vmatpush1.bf16.msra.mxu0 %v215
    %459 = vmatprep.subr.bf16.mxu0 %v218
    %460 = vmatpush1.bf16.msra.mxu0 %v217
    %461 = vmatprep.subr.bf16.mxu0 %v220
    %462 = vmatpush1.bf16.msra.mxu0 %v219
    %463 = vmatprep.subr.bf16.mxu0 %v222
    %464 = vmatpush1.bf16.msra.mxu0 %v221
    %465 = vmatprep.subr.bf16.mxu0 %v224
    %466 = vmatpush1.bf16.msra.mxu0 %v223
    %467 = vmatprep.subr.bf16.mxu0 %v226
    %468 = vmatpush1.bf16.msra.mxu0 %v225
    %469 = vmatprep.subr.bf16.mxu0 %v228
    %470 = vmatpush1.bf16.msra.mxu0 %v227
    %471 = vmatprep.subr.bf16.mxu0 %v230
    %472 = vmatpush1.bf16.msra.mxu0 %v229
    %473 = vmatprep.subr.bf16.mxu0 %v232
    %474 = vmatpush1.bf16.msra.mxu0 %v231
    %475 = vmatprep.subr.bf16.mxu0 %v234
    %476 = vmatpush1.bf16.msra.mxu0 %v233
    %477 = vmatprep.subr.bf16.mxu0 %v236
    %478 = vmatpush1.bf16.msra.mxu0 %v235
    %479 = vmatprep.subr.bf16.mxu0 %v238
    %480 = vmatpush1.bf16.msra.mxu0 %v237
    %481 = vmatprep.subr.bf16.mxu0 %v240
    %482 = vmatpush1.bf16.msra.mxu0 %v239
    %483 = vmatprep.subr.bf16.mxu0 %v242
    %484 = vmatpush1.bf16.msra.mxu0 %v241
    %485 = vmatprep.subr.bf16.mxu0 %v244
    %486 = vmatpush1.bf16.msra.mxu0 %v243
    %487 = vmatprep.mubr.bf16.mxu0 %v386
    %488 = vmatmul.mubr.bf16.gmra.mrb[0].mxu0 %v385
    %v489 = vpop.f32.mrb[0].mxu0
    %v490 = vadd.f32 %v449, %v489
    %v491 = vpop.f32.mrb[0].mxu0
    %v492 = vadd.f32 %v451, %v491
    %v493 = vpop.f32.mrb[0].mxu0
    %v494 = vpop.f32.mrb[0].mxu0
    %495 = vdwg.mxu0
    %v496 = vmul.f32 %v490, 0.03125
    %v497 = vmul.f32 %v492, 0.03125
    %v498 = vadd.f32 %v496, 1e-09
    %v499 = vadd.f32 %v497, 1e-09
    %v500 = vrsqrt.pop %v498
    %v501 = vrsqrt.pop %v499
    %v504 = vcombine.low %v500, %v501
    %v506 = vunpack.c.l.s4 1983009808
    %v507 = vunpack.c.0.s8 %v506
    %v508 = vlaneseq
    %v509 = vshrl.u32 %v508, 7
    %v510 = vsub.s32 %v507, %v509
    %v511 = vrot.slane %v504, %v510
    %v513 = vmul.f32 %v372, %v511
    %v514 = vld [vmem:[%s1] sm:$0x3]
    %v516 = vlaneseq
    %v517 = vshrl.u32 %v516, 7
    %v518 = vsub.s32 0, %v517
    %v519 = vrot.slane %v514, %v518
    %v520 = vlaneseq
    %v521 = vshrl.u32 %v520, 7
    %v522 = vsub.s32 1, %v521
    %v523 = vrot.slane %v514, %v522
    %v524 = vcombine.low %v519, %v523
    %v526 = vunpack.c.l.s4 1983009808
    %v527 = vunpack.c.0.s8 %v526
    %v528 = vlaneseq
    %v529 = vshrl.u32 %v528, 7
    %v530 = vsub.s32 %v527, %v529
    %v531 = vrot.slane %v524, %v530
    %v533 = vmul.f32 %v513, %v531
    %v534 = vld [vmem:[%s2] sm:$0x3]
    %v536 = vlaneseq
    %v537 = vshrl.u32 %v536, 7
    %v538 = vsub.s32 0, %v537
    %v539 = vrot.slane %v534, %v538
    %v540 = vlaneseq
    %v541 = vshrl.u32 %v540, 7
    %v542 = vsub.s32 1, %v541
    %v543 = vrot.slane %v534, %v542
    %v544 = vcombine.low %v539, %v543
    %v546 = vunpack.c.l.s4 1983009808
    %v547 = vunpack.c.0.s8 %v546
    %v548 = vlaneseq
    %v549 = vshrl.u32 %v548, 7
    %v550 = vsub.s32 %v547, %v549
    %v551 = vrot.slane %v544, %v550
    %v553 = vadd.f32 %v533, %v551
    %554 = vst [vmem:[#allocation7] sm:$0xf] %v553
    // Predicated region
    $region26: #{tpu_custom_call.1} parent=1 // pred_check
      _
    $region27: #{tpu_custom_call.1} parent=1 // pred_check_branch
      %556 = sbr.rel (0) target = $region29
    $region28: #{tpu_custom_call.1} parent=1 // pred_region
      %s558 = ssub.s32 64, 64
      %559 = vsyncadd [#allocation4], %s558
      %s561 = sshll.u32 [#allocation7], 4
      %s562 = int_to_ptr.vmem [resolvable:$true] %s561
      %564 = dma.vmem_to_hbm [thread:$0]  %s562, 64, %s4, [#allocation4]
    $region29: #{tpu_custom_call.1} parent=1 // pred_fallthru
      _
    // Predicated region
    $region30: #{tpu_custom_call.1} parent=1 // pred_check
      _
    $region31: #{tpu_custom_call.1} parent=1 // pred_check_branch
      %566 = sbr.rel (0) target = $region33
    $region32: #{tpu_custom_call.1} parent=1 // pred_region
      %567 = dma.done [#allocation4], 64
    $region33: #{tpu_custom_call.1} parent=1 // pred_fallthru
      _
    %568 = vsyncpa [#allocation3], 1
    %569 = vsyncpa [#allocation6], 1
    %570 = vsyncpa [#allocation4], 1

</llo_original>
